<compile_context>
chip_gen: v5e
topology: v5e:2x2
jax: 0.10.0
libtpu: 0.0.40
codegen_flags: <defaults>
</compile_context>

<pallas_src>
import jax
import jax.numpy as jnp
from jax.experimental import pallas as pl
from jax.experimental.pallas import tpu as pltpu


def text_tower_kernel(x_ref, w1_ref, b1_ref, w2_ref, b2_ref, o_ref):
    # fc1 -> bias -> relu   (bf16 MXU inputs, f32 accumulation / epilogue)
    h = jnp.dot(x_ref[...], w1_ref[...], preferred_element_type=jnp.float32)
    h = jnp.maximum(h + b1_ref[...], 0.0)

    # F.dropout(p=0.15, training=self.training): module evaluated in eval mode,
    # so dropout is the identity.
    # TODO(synk): add stochastic dropout via pltpu.prng_random_bits for training mode.

    # fc2 -> bias -> relu
    h2 = jnp.dot(h.astype(w2_ref.dtype), w2_ref[...],
                 preferred_element_type=jnp.float32)
    h2 = jnp.maximum(h2 + b2_ref[...], 0.0)

    # F.normalize(p=2, dim=1): x / max(||x||_2, eps), eps = 1e-12 (PyTorch default).
    # rsqrt(max(||x||^2, eps^2)) * x  ==  x / max(||x||, eps), but rsqrt runs on
    # the EUP slot and avoids a full-tile VPU divide.
    sq = jnp.sum(h2 * h2, axis=1, keepdims=True)
    o_ref[...] = (h2 * jax.lax.rsqrt(jnp.maximum(sq, 1e-24))).astype(o_ref.dtype)


def text_tower_forward(x, w1_t, b1, w2_t, b2, *, tile_b=128, use_bf16=True):
    """x: [B, D_in]; w1_t: [D_in, H]; b1: [1, H]; w2_t: [H, H]; b2: [1, H]."""
    B, D_in = x.shape
    H = w1_t.shape[1]

    # Pad feature dim to a multiple of 128 (lane width) with zeros; zero-pad the
    # matching w1_t rows so the matmul result is unchanged.
    d_pad = (-D_in) % 128
    if d_pad:
        x = jnp.pad(x, ((0, 0), (0, d_pad)))
        w1_t = jnp.pad(w1_t, ((0, d_pad), (0, 0)))
    # Pad batch up to a multiple of the batch tile (padded rows are discarded).
    b_pad = (-B) % tile_b
    if b_pad:
        x = jnp.pad(x, ((0, b_pad), (0, 0)))
    Bp, Dp = x.shape

    # bf16 matmul operands (halves HBM traffic, ~2x MXU throughput on v6e/v7x);
    # accumulation and all element-wise math stay f32.
    mm_dtype = jnp.bfloat16 if use_bf16 else jnp.float32
    x = x.astype(mm_dtype)
    w1_t = w1_t.astype(mm_dtype)
    w2_t = w2_t.astype(mm_dtype)
    b1 = b1.astype(jnp.float32)
    b2 = b2.astype(jnp.float32)

    grid = (Bp // tile_b,)

    flops = 2 * Bp * (Dp * H + H * H)
    bytes_accessed = (
        x.size * x.dtype.itemsize
        + w1_t.size * w1_t.dtype.itemsize
        + w2_t.size * w2_t.dtype.itemsize
        + (b1.size + b2.size) * 4
        + Bp * H * 4
    )

    out = pl.pallas_call(
        text_tower_kernel,
        out_shape=jax.ShapeDtypeStruct((Bp, H), jnp.float32),
        grid=grid,
        in_specs=[
            # Activations: tiled over batch (auto double-buffered).
            pl.BlockSpec((tile_b, Dp), lambda i: (i, 0)),
            # Weights / biases: constant block index -> fetched once, VMEM-resident.
            pl.BlockSpec((Dp, H), lambda i: (0, 0)),
            pl.BlockSpec((1, H), lambda i: (0, 0)),
            pl.BlockSpec((H, H), lambda i: (0, 0)),
            pl.BlockSpec((1, H), lambda i: (0, 0)),
        ],
        out_specs=pl.BlockSpec((tile_b, H), lambda i: (i, 0)),
        compiler_params=pltpu.CompilerParams(
            dimension_semantics=("parallel",),
            vmem_limit_bytes=64 * 1024 * 1024,
        ),
        cost_estimate=pl.CostEstimate(
            flops=flops, transcendentals=Bp, bytes_accessed=bytes_accessed
        ),
    )(x, w1_t, b1, w2_t, b2)

    return out[:B]


if __name__ == "__main__":
    # Small config consistent with HUSE_config:
    #   input_size = tfidf_dim + bert_hidden_dim * num_bert_layers = 32 + 32*4 = 160
    #   hidden_size = text_tower_hidden_dim = 128 (shrunk from 512 for the demo)
    tfidf_dim = 32
    bert_hidden_dim = 32
    num_bert_layers = 4
    input_size = tfidf_dim + bert_hidden_dim * num_bert_layers  # 160
    hidden_size = 128
    batch = 8

    key = jax.random.PRNGKey(0)
    kx, kw1, kb1, kw2, kb2 = jax.random.split(key, 5)

    x = jax.random.normal(kx, (batch, input_size), dtype=jnp.float32)

    # Deterministic parameter init (Kaiming-uniform-ish scale, like nn.Linear),
    # stored pre-transposed: [in_features, out_features].
    lim1 = 1.0 / jnp.sqrt(input_size)
    lim2 = 1.0 / jnp.sqrt(hidden_size)
    w1_t = jax.random.uniform(kw1, (input_size, hidden_size), jnp.float32, -lim1, lim1)
    b1 = jax.random.uniform(kb1, (1, hidden_size), jnp.float32, -lim1, lim1)
    w2_t = jax.random.uniform(kw2, (hidden_size, hidden_size), jnp.float32, -lim2, lim2)
    b2 = jax.random.uniform(kb2, (1, hidden_size), jnp.float32, -lim2, lim2)

    out = text_tower_forward(x, w1_t, b1, w2_t, b2)
    out = jax.block_until_ready(out)

    # Sanity check against a pure-JAX f32 reference (tolerance loosened for the
    # bf16 matmul operands; accumulation / epilogue are f32).
    h_ref = jnp.maximum(x @ w1_t + b1, 0.0)
    h2_ref = jnp.maximum(h_ref @ w2_t + b2, 0.0)
    ref = h2_ref / jnp.maximum(
        jnp.sqrt(jnp.sum(h2_ref * h2_ref, axis=1, keepdims=True)), 1e-12
    )
    assert out.shape == (batch, hidden_size)
    assert jnp.allclose(out, ref, atol=2e-2, rtol=2e-2)

    print("KERNEL_OK")
</pallas_src>

<mosaic_0001>
module attributes {stable_mosaic.version = 11 : i64} {
  func.func @text_tower_kernel(%arg0: i32, %arg1: memref<128x256xbf16, #tpu.memory_space<vmem>>, %arg2: memref<256x128xbf16, #tpu.memory_space<vmem>>, %arg3: memref<1x128xf32, #tpu.memory_space<vmem>>, %arg4: memref<128x128xbf16, #tpu.memory_space<vmem>>, %arg5: memref<1x128xf32, #tpu.memory_space<vmem>>, %arg6: memref<128x128xf32, #tpu.memory_space<vmem>>) attributes {dimension_semantics = [#tpu.dimension_semantics<parallel>], iteration_bounds = array<i64: 1>, scalar_prefetch = 0 : i64, scratch_operands = 0 : i64, tpu.core_type = #tpu.core_type<tc>, window_params = [{transform_indices = @transform_0, window_bounds = array<i64: 128, 256>}, {pipeline_mode = #tpu.pipeline_mode<synchronous>, transform_indices = @transform_1, window_bounds = array<i64: 256, 128>}, {pipeline_mode = #tpu.pipeline_mode<synchronous>, transform_indices = @transform_2, window_bounds = array<i64: 1, 128>}, {pipeline_mode = #tpu.pipeline_mode<synchronous>, transform_indices = @transform_3, window_bounds = array<i64: 128, 128>}, {pipeline_mode = #tpu.pipeline_mode<synchronous>, transform_indices = @transform_4, window_bounds = array<i64: 1, 128>}, {transform_indices = @transform_5, window_bounds = array<i64: 128, 128>}]} {
    %c0 = arith.constant 0 : index
    %c0_0 = arith.constant 0 : index
    %0 = vector.load %arg1[%c0, %c0_0] : memref<128x256xbf16, #tpu.memory_space<vmem>>, vector<128x256xbf16>
    %c0_1 = arith.constant 0 : index
    %c0_2 = arith.constant 0 : index
    %1 = vector.load %arg2[%c0_1, %c0_2] : memref<256x128xbf16, #tpu.memory_space<vmem>>, vector<256x128xbf16>
    %cst = arith.constant dense<0.000000e+00> : vector<128x128xf32>
    %2 = tpu.matmul %0, %1, %cst {dimension_numbers = #tpu.dot_dimension_numbers<[1], [0], [0], [1], [0, 0, 1, 1], [], []>} : vector<128x256xbf16>, vector<256x128xbf16>, vector<128x128xf32> -> vector<128x128xf32>
    %c0_3 = arith.constant 0 : index
    %c0_4 = arith.constant 0 : index
    %3 = vector.load %arg3[%c0_3, %c0_4] : memref<1x128xf32, #tpu.memory_space<vmem>>, vector<1x128xf32>
    %4 = vector.broadcast %3 : vector<1x128xf32> to vector<128x128xf32>
    %5 = arith.addf %2, %4 : vector<128x128xf32>
    %cst_5 = arith.constant 0.000000e+00 : f32
    %6 = vector.broadcast %cst_5 : f32 to vector<128x128xf32>
    %7 = arith.maximumf %5, %6 : vector<128x128xf32>
    %8 = arith.truncf %7 : vector<128x128xf32> to vector<128x128xbf16>
    %c0_6 = arith.constant 0 : index
    %c0_7 = arith.constant 0 : index
    %9 = vector.load %arg4[%c0_6, %c0_7] : memref<128x128xbf16, #tpu.memory_space<vmem>>, vector<128x128xbf16>
    %cst_8 = arith.constant dense<0.000000e+00> : vector<128x128xf32>
    %10 = tpu.matmul %8, %9, %cst_8 {dimension_numbers = #tpu.dot_dimension_numbers<[1], [0], [0], [1], [0, 0, 1, 1], [], []>} : vector<128x128xbf16>, vector<128x128xbf16>, vector<128x128xf32> -> vector<128x128xf32>
    %c0_9 = arith.constant 0 : index
    %c0_10 = arith.constant 0 : index
    %11 = vector.load %arg5[%c0_9, %c0_10] : memref<1x128xf32, #tpu.memory_space<vmem>>, vector<1x128xf32>
    %12 = vector.broadcast %11 : vector<1x128xf32> to vector<128x128xf32>
    %13 = arith.addf %10, %12 : vector<128x128xf32>
    %cst_11 = arith.constant 0.000000e+00 : f32
    %14 = vector.broadcast %cst_11 : f32 to vector<128x128xf32>
    %15 = arith.maximumf %13, %14 : vector<128x128xf32>
    %16 = arith.mulf %15, %15 : vector<128x128xf32>
    %cst_12 = arith.constant dense<0.000000e+00> : vector<128xf32>
    %17 = vector.multi_reduction <add>, %16, %cst_12 [1] : vector<128x128xf32> to vector<128xf32>
    %18 = vector.shape_cast %17 : vector<128xf32> to vector<128x1xf32>
    %cst_13 = arith.constant 1.000000e-24 : f32
    %19 = vector.broadcast %cst_13 : f32 to vector<128x1xf32>
    %20 = arith.maximumf %18, %19 : vector<128x1xf32>
    %21 = math.rsqrt %20 : vector<128x1xf32>
    %22 = vector.broadcast %21 : vector<128x1xf32> to vector<128x128xf32>
    %23 = arith.mulf %15, %22 : vector<128x128xf32>
    %c0_14 = arith.constant 0 : index
    %c0_15 = arith.constant 0 : index
    %24 = vector.load %arg6[%c0_14, %c0_15] : memref<128x128xf32, #tpu.memory_space<vmem>>, vector<128x128xf32>
    tpu.vector_store %arg6[%c0_14, %c0_15], %23 {strides = array<i32>} : memref<128x128xf32, #tpu.memory_space<vmem>>, vector<128x128xf32>,
    return
  }
  func.func @transform_0(%arg0: i32) -> (i32, i32) {
    %c0_i32 = arith.constant 0 : i32
    %c0_i32_0 = arith.constant 0 : i32
    return %arg0, %c0_i32 : i32, i32
  }
  func.func @transform_1(%arg0: i32) -> (i32, i32) {
    %c0_i32 = arith.constant 0 : i32
    %c0_i32_0 = arith.constant 0 : i32
    %c0_i32_1 = arith.constant 0 : i32
    return %c0_i32, %c0_i32_0 : i32, i32
  }
  func.func @transform_2(%arg0: i32) -> (i32, i32) {
    %c0_i32 = arith.constant 0 : i32
    %c0_i32_0 = arith.constant 0 : i32
    %c0_i32_1 = arith.constant 0 : i32
    return %c0_i32, %c0_i32_0 : i32, i32
  }
  func.func @transform_3(%arg0: i32) -> (i32, i32) {
    %c0_i32 = arith.constant 0 : i32
    %c0_i32_0 = arith.constant 0 : i32
    %c0_i32_1 = arith.constant 0 : i32
    return %c0_i32, %c0_i32_0 : i32, i32
  }
  func.func @transform_4(%arg0: i32) -> (i32, i32) {
    %c0_i32 = arith.constant 0 : i32
    %c0_i32_0 = arith.constant 0 : i32
    %c0_i32_1 = arith.constant 0 : i32
    return %c0_i32, %c0_i32_0 : i32, i32
  }
  func.func @transform_5(%arg0: i32) -> (i32, i32) {
    %c0_i32 = arith.constant 0 : i32
    %c0_i32_0 = arith.constant 0 : i32
    return %arg0, %c0_i32 : i32, i32
  }
}

</mosaic_0001>

<llo_original>
// kernel: tpu_custom_call.1
$region0: #{tpu_custom_call.1}
  #allocation0 [shape = 'u32[]', space=smem, size = 0x4, offset = 0x4, fixed_abs, tag = 'smem constant byte address 0x4 - core index']
  #allocation1 [shape = 'u32[72,128]{1,0:T(1,128)}', space=vmem, size = 0x9000, scoped, tag = 'internal scratch']
  %s0 = inlined_call_operand.hbm [shape: bf16[128,256], index: 0, kind: input, shape index: {}]
  %s1 = inlined_call_operand.hbm [shape: bf16[256,128], index: 1, kind: input, shape index: {}]
  %s2 = inlined_call_operand.vmem [shape: f32[1,128], index: 2, kind: input, shape index: {}]
  %s3 = inlined_call_operand.hbm [shape: bf16[128,128], index: 3, kind: input, shape index: {}]
  %s4 = inlined_call_operand.vmem [shape: f32[1,128], index: 4, kind: input, shape index: {}]
  %s5 = inlined_call_operand.hbm [shape: f32[128,128], index: 5, kind: output, shape index: {}]
  %s6 = sld [smem:[#allocation0]]
  $region42: #{tpu_custom_call.1} parent=0
    _
  %s8 = ssub.s32 1, %s6
  %s9 = scalar_select 0, %s8, %s6
  $region1: #{tpu_custom_call.1} parent=0
    #allocation2 [shape = 'u8[65536]{0}', space=vmem, size = 0x10000, scoped, tag = 'input window, operand 0, single buffered']
    #allocation3 [shape = 's32[1]{0}', space=sflag, size = 0x4, scoped, tag = 'scoped memory for tpu_custom_call.1']
    #allocation4 [shape = 's32[1]{0}', space=sflag, size = 0x4, scoped, tag = 'scoped memory for tpu_custom_call.1']
    #allocation5 [shape = 'u8[65536]{0}', space=vmem, size = 0x10000, scoped, tag = 'input window, operand 1, single buffered']
    #allocation6 [shape = 's32[1]{0}', space=sflag, size = 0x4, scoped, tag = 'scoped memory for tpu_custom_call.1']
    #allocation7 [shape = 'u8[32768]{0}', space=vmem, size = 0x8000, scoped, tag = 'input window, operand 3, single buffered']
    #allocation8 [shape = 'u8[65536]{0}', space=vmem, size = 0x10000, scoped, tag = 'output window, operand 0, single buffered']
    %10 = vsyncpa [#allocation3], 0
    %11 = vsyncpa [#allocation6], 0
    %12 = vsyncpa [#allocation4], 0
    // Predicated region
    $region2: #{tpu_custom_call.1} parent=1 // pred_check
      _
    $region3: #{tpu_custom_call.1} parent=1 // pred_check_branch
      %14 = sbr.rel (0) target = $region5
    $region4: #{tpu_custom_call.1} parent=1 // pred_region
      %16 = vsyncadd [#allocation3], 0
      %s17 = sshll.u32 %s0, 4
      %s18 = int_to_ptr.hbm [resolvable:$true] %s17
      %s19 = sshll.u32 [#allocation2], 4
      %s20 = int_to_ptr.vmem [resolvable:$true] %s19
      %25 = dma.hbm_to_vmem [thread:$0]  %s18, 2048, %s20, [#allocation3], 128, 128, 8
    $region5: #{tpu_custom_call.1} parent=1 // pred_fallthru
      _
    // Predicated region
    $region6: #{tpu_custom_call.1} parent=1 // pred_check
      _
    $region7: #{tpu_custom_call.1} parent=1 // pred_check_branch
      %27 = sbr.rel (0) target = $region9
    $region8: #{tpu_custom_call.1} parent=1 // pred_region
      %29 = vsyncadd [#allocation6], 0
      %s30 = sshll.u32 %s1, 4
      %s31 = int_to_ptr.hbm [resolvable:$true] %s30
      %s32 = sshll.u32 [#allocation5], 4
      %s33 = int_to_ptr.vmem [resolvable:$true] %s32
      %38 = dma.hbm_to_vmem [thread:$0]  %s31, 2048, %s33, [#allocation6], 64, 64, 4
    $region9: #{tpu_custom_call.1} parent=1 // pred_fallthru
      _
    // Predicated region
    $region10: #{tpu_custom_call.1} parent=1 // pred_check
      _
    $region11: #{tpu_custom_call.1} parent=1 // pred_check_branch
      %40 = sbr.rel (0) target = $region13
    $region12: #{tpu_custom_call.1} parent=1 // pred_region
      _
    $region13: #{tpu_custom_call.1} parent=1 // pred_fallthru
      _
    // Predicated region
    $region14: #{tpu_custom_call.1} parent=1 // pred_check
      _
    $region15: #{tpu_custom_call.1} parent=1 // pred_check_branch
      %42 = sbr.rel (0) target = $region17
    $region16: #{tpu_custom_call.1} parent=1 // pred_region
      %44 = vsyncadd [#allocation6], 0
      %s45 = sshll.u32 %s3, 4
      %s46 = int_to_ptr.hbm [resolvable:$true] %s45
      %s47 = sshll.u32 [#allocation7], 4
      %s48 = int_to_ptr.vmem [resolvable:$true] %s47
      %53 = dma.hbm_to_vmem [thread:$0]  %s46, 1024, %s48, [#allocation6], 64, 64, 4
    $region17: #{tpu_custom_call.1} parent=1 // pred_fallthru
      _
    // Predicated region
    $region18: #{tpu_custom_call.1} parent=1 // pred_check
      _
    $region19: #{tpu_custom_call.1} parent=1 // pred_check_branch
      %55 = sbr.rel (0) target = $region21
    $region20: #{tpu_custom_call.1} parent=1 // pred_region
      _
    $region21: #{tpu_custom_call.1} parent=1 // pred_fallthru
      _
    // Predicated region
    $region22: #{tpu_custom_call.1} parent=1 // pred_check
      _
    $region23: #{tpu_custom_call.1} parent=1 // pred_check_branch
      %57 = sbr.rel (0) target = $region25
    $region24: #{tpu_custom_call.1} parent=1 // pred_region
      %59 = dma.done [#allocation3], 2048
    $region25: #{tpu_custom_call.1} parent=1 // pred_fallthru
      _
    // Predicated region
    $region26: #{tpu_custom_call.1} parent=1 // pred_check
      _
    $region27: #{tpu_custom_call.1} parent=1 // pred_check_branch
      %61 = sbr.rel (0) target = $region29
    $region28: #{tpu_custom_call.1} parent=1 // pred_region
      %63 = dma.done [#allocation6], 2048
    $region29: #{tpu_custom_call.1} parent=1 // pred_fallthru
      _
    // Predicated region
    $region30: #{tpu_custom_call.1} parent=1 // pred_check
      _
    $region31: #{tpu_custom_call.1} parent=1 // pred_check_branch
      %65 = sbr.rel (0) target = $region33
    $region32: #{tpu_custom_call.1} parent=1 // pred_region
      %67 = dma.done [#allocation6], 1024
    $region33: #{tpu_custom_call.1} parent=1 // pred_fallthru
      _
    %v68 = vld [vmem:[#allocation2] sm:$0xff]
    %v69 = vld [vmem:[#allocation2 + $0x8] sm:$0xff]
    %v70 = vld [vmem:[#allocation2 + $0x10] sm:$0xff]
    %v71 = vld [vmem:[#allocation2 + $0x18] sm:$0xff]
    %v72 = vld [vmem:[#allocation2 + $0x20] sm:$0xff]
    %v73 = vld [vmem:[#allocation2 + $0x28] sm:$0xff]
    %v74 = vld [vmem:[#allocation2 + $0x30] sm:$0xff]
    %v75 = vld [vmem:[#allocation2 + $0x38] sm:$0xff]
    %v76 = vld [vmem:[#allocation2 + $0x40] sm:$0xff]
    %v77 = vld [vmem:[#allocation2 + $0x48] sm:$0xff]
    %v78 = vld [vmem:[#allocation2 + $0x50] sm:$0xff]
    %v79 = vld [vmem:[#allocation2 + $0x58] sm:$0xff]
    %v80 = vld [vmem:[#allocation2 + $0x60] sm:$0xff]
    %v81 = vld [vmem:[#allocation2 + $0x68] sm:$0xff]
    %v82 = vld [vmem:[#allocation2 + $0x70] sm:$0xff]
    %v83 = vld [vmem:[#allocation2 + $0x78] sm:$0xff]
    %v84 = vld [vmem:[#allocation5] sm:$0xf]
    %v85 = vld [vmem:[#allocation5 + $0x4] sm:$0xf]
    %v86 = vld [vmem:[#allocation5 + $0x8] sm:$0xf]
    %v87 = vld [vmem:[#allocation5 + $0xc] sm:$0xf]
    %v88 = vld [vmem:[#allocation5 + $0x10] sm:$0xf]
    %v89 = vld [vmem:[#allocation5 + $0x14] sm:$0xf]
    %v90 = vld [vmem:[#allocation5 + $0x18] sm:$0xf]
    %v91 = vld [vmem:[#allocation5 + $0x1c] sm:$0xf]
    %v92 = vld [vmem:[#allocation5 + $0x20] sm:$0xf]
    %v93 = vld [vmem:[#allocation5 + $0x24] sm:$0xf]
    %v94 = vld [vmem:[#allocation5 + $0x28] sm:$0xf]
    %v95 = vld [vmem:[#allocation5 + $0x2c] sm:$0xf]
    %v96 = vld [vmem:[#allocation5 + $0x30] sm:$0xf]
    %v97 = vld [vmem:[#allocation5 + $0x34] sm:$0xf]
    %v98 = vld [vmem:[#allocation5 + $0x38] sm:$0xf]
    %v99 = vld [vmem:[#allocation5 + $0x3c] sm:$0xf]
    %v100 = vld [vmem:[#allocation5 + $0x40] sm:$0xf]
    %v101 = vld [vmem:[#allocation5 + $0x44] sm:$0xf]
    %v102 = vld [vmem:[#allocation5 + $0x48] sm:$0xf]
    %v103 = vld [vmem:[#allocation5 + $0x4c] sm:$0xf]
    %v104 = vld [vmem:[#allocation5 + $0x50] sm:$0xf]
    %v105 = vld [vmem:[#allocation5 + $0x54] sm:$0xf]
    %v106 = vld [vmem:[#allocation5 + $0x58] sm:$0xf]
    %v107 = vld [vmem:[#allocation5 + $0x5c] sm:$0xf]
    %v108 = vld [vmem:[#allocation5 + $0x60] sm:$0xf]
    %v109 = vld [vmem:[#allocation5 + $0x64] sm:$0xf]
    %v110 = vld [vmem:[#allocation5 + $0x68] sm:$0xf]
    %v111 = vld [vmem:[#allocation5 + $0x6c] sm:$0xf]
    %v112 = vld [vmem:[#allocation5 + $0x70] sm:$0xf]
    %v113 = vld [vmem:[#allocation5 + $0x74] sm:$0xf]
    %v114 = vld [vmem:[#allocation5 + $0x78] sm:$0xf]
    %v115 = vld [vmem:[#allocation5 + $0x7c] sm:$0xf]
    %v116 = vld [vmem:[%s2] sm:$0x1]
    %v118 = vperm.slane %v116, 0
    %v136 = vunpack.c.l.b16 %v68
    %v137 = vunpack.c.h.b16 %v68
    %v138 = vunpack.c.l.b16 %v69
    %v139 = vunpack.c.h.b16 %v69
    %v140 = vunpack.c.l.b16 %v70
    %v141 = vunpack.c.h.b16 %v70
    %v142 = vunpack.c.l.b16 %v71
    %v143 = vunpack.c.h.b16 %v71
    %v144 = vunpack.c.l.b16 %v72
    %v145 = vunpack.c.h.b16 %v72
    %v146 = vunpack.c.l.b16 %v73
    %v147 = vunpack.c.h.b16 %v73
    %v148 = vunpack.c.l.b16 %v74
    %v149 = vunpack.c.h.b16 %v74
    %v150 = vunpack.c.l.b16 %v75
    %v151 = vunpack.c.h.b16 %v75
    %v152 = vunpack.c.l.b16 %v76
    %v153 = vunpack.c.h.b16 %v76
    %v154 = vunpack.c.l.b16 %v77
    %v155 = vunpack.c.h.b16 %v77
    %v156 = vunpack.c.l.b16 %v78
    %v157 = vunpack.c.h.b16 %v78
    %v158 = vunpack.c.l.b16 %v79
    %v159 = vunpack.c.h.b16 %v79
    %v160 = vunpack.c.l.b16 %v80
    %v161 = vunpack.c.h.b16 %v80
    %v162 = vunpack.c.l.b16 %v81
    %v163 = vunpack.c.h.b16 %v81
    %v164 = vunpack.c.l.b16 %v82
    %v165 = vunpack.c.h.b16 %v82
    %v166 = vunpack.c.l.b16 %v83
    %v167 = vunpack.c.h.b16 %v83
    %v168 = vpack.c.b16 %v138, %v136
    %v169 = vpack.c.b16 %v139, %v137
    %v170 = vpack.c.b16 %v142, %v140
    %v171 = vpack.c.b16 %v143, %v141
    %v172 = vpack.c.b16 %v146, %v144
    %v173 = vpack.c.b16 %v147, %v145
    %v174 = vpack.c.b16 %v150, %v148
    %v175 = vpack.c.b16 %v151, %v149
    %v176 = vpack.c.b16 %v154, %v152
    %v177 = vpack.c.b16 %v155, %v153
    %v178 = vpack.c.b16 %v158, %v156
    %v179 = vpack.c.b16 %v159, %v157
    %v180 = vpack.c.b16 %v162, %v160
    %v181 = vpack.c.b16 %v163, %v161
    %v182 = vpack.c.b16 %v166, %v164
    %v183 = vpack.c.b16 %v167, %v165
    %v232 = vunpack.c.l.b16 %v84
    %v233 = vunpack.c.l.b16 %v85
    %v234 = vunpack.c.l.b16 %v86
    %v235 = vunpack.c.l.b16 %v87
    %v236 = vunpack.c.l.b16 %v88
    %v237 = vunpack.c.l.b16 %v89
    %v238 = vunpack.c.l.b16 %v90
    %v239 = vunpack.c.l.b16 %v91
    %v240 = vunpack.c.l.b16 %v92
    %v241 = vunpack.c.l.b16 %v93
    %v242 = vunpack.c.l.b16 %v94
    %v243 = vunpack.c.l.b16 %v95
    %v244 = vunpack.c.l.b16 %v96
    %v245 = vunpack.c.l.b16 %v97
    %v246 = vunpack.c.l.b16 %v98
    %v247 = vunpack.c.l.b16 %v99
    %v248 = vunpack.c.l.b16 %v100
    %v249 = vunpack.c.l.b16 %v101
    %v250 = vunpack.c.l.b16 %v102
    %v251 = vunpack.c.l.b16 %v103
    %v252 = vunpack.c.l.b16 %v104
    %v253 = vunpack.c.l.b16 %v105
    %v254 = vunpack.c.l.b16 %v106
    %v255 = vunpack.c.l.b16 %v107
    %v256 = vunpack.c.l.b16 %v108
    %v257 = vunpack.c.l.b16 %v109
    %v258 = vunpack.c.l.b16 %v110
    %v259 = vunpack.c.l.b16 %v111
    %v260 = vunpack.c.l.b16 %v112
    %v261 = vunpack.c.l.b16 %v113
    %v262 = vunpack.c.l.b16 %v114
    %v263 = vunpack.c.l.b16 %v115
    %v264 = vpack.c.b16 %v233, %v232
    %v265 = vpack.c.b16 %v235, %v234
    %v266 = vpack.c.b16 %v237, %v236
    %v267 = vpack.c.b16 %v239, %v238
    %v268 = vpack.c.b16 %v241, %v240
    %v269 = vpack.c.b16 %v243, %v242
    %v270 = vpack.c.b16 %v245, %v244
    %v271 = vpack.c.b16 %v247, %v246
    %v272 = vpack.c.b16 %v249, %v248
    %v273 = vpack.c.b16 %v251, %v250
    %v274 = vpack.c.b16 %v253, %v252
    %v275 = vpack.c.b16 %v255, %v254
    %v276 = vpack.c.b16 %v257, %v256
    %v277 = vpack.c.b16 %v259, %v258
    %v278 = vpack.c.b16 %v261, %v260
    %v279 = vpack.c.b16 %v263, %v262
    %296 = vmatpush.bf16.msra.mxu0 %v271
    %297 = vmatpush.bf16.msra.mxu0 %v270
    %298 = vmatpush.bf16.msra.mxu0 %v269
    %299 = vmatpush.bf16.msra.mxu0 %v268
    %300 = vmatpush.bf16.msra.mxu0 %v267
    %301 = vmatpush.bf16.msra.mxu0 %v266
    %302 = vmatpush.bf16.msra.mxu0 %v265
    %303 = vmatpush.bf16.msra.mxu0 %v264
    %304 = vmatmul.bf16.gmra.mxu0 %v168
    %v305 = vpop.f32.mrf.mxu0
    %v306 = vadd.f32 %v118, %v305
    %v307 = vpop.f32.mrf.mxu0
    %v308 = vadd.f32 %v118, %v307
    %309 = vmatmul.bf16.gmra.mxu0 %v170
    %v310 = vpop.f32.mrf.mxu0
    %v311 = vadd.f32 %v118, %v310
    %v312 = vpop.f32.mrf.mxu0
    %v313 = vadd.f32 %v118, %v312
    %314 = vmatmul.bf16.gmra.mxu0 %v172
    %v315 = vpop.f32.mrf.mxu0
    %v316 = vadd.f32 %v118, %v315
    %v317 = vpop.f32.mrf.mxu0
    %v318 = vadd.f32 %v118, %v317
    %319 = vmatmul.bf16.gmra.mxu0 %v174
    %v320 = vpop.f32.mrf.mxu0
    %v321 = vadd.f32 %v118, %v320
    %v322 = vpop.f32.mrf.mxu0
    %v323 = vadd.f32 %v118, %v322
    %324 = vmatmul.bf16.gmra.mxu0 %v176
    %v325 = vpop.f32.mrf.mxu0
    %v326 = vadd.f32 %v118, %v325
    %v327 = vpop.f32.mrf.mxu0
    %v328 = vadd.f32 %v118, %v327
    %329 = vmatmul.bf16.gmra.mxu0 %v178
    %v330 = vpop.f32.mrf.mxu0
    %v331 = vadd.f32 %v118, %v330
    %v332 = vpop.f32.mrf.mxu0
    %v333 = vadd.f32 %v118, %v332
    %334 = vmatmul.bf16.gmra.mxu0 %v180
    %v335 = vpop.f32.mrf.mxu0
    %v336 = vadd.f32 %v118, %v335
    %v337 = vpop.f32.mrf.mxu0
    %v338 = vadd.f32 %v118, %v337
    %339 = vmatmul.bf16.gmra.mxu0 %v182
    %v340 = vpop.f32.mrf.mxu0
    %v341 = vadd.f32 %v118, %v340
    %v342 = vpop.f32.mrf.mxu0
    %v343 = vadd.f32 %v118, %v342
    %344 = vdwg.mxu0
    %345 = vmatpush.bf16.msra.mxu0 %v279
    %346 = vmatpush.bf16.msra.mxu0 %v278
    %347 = vmatpush.bf16.msra.mxu0 %v277
    %348 = vmatpush.bf16.msra.mxu0 %v276
    %349 = vmatpush.bf16.msra.mxu0 %v275
    %350 = vmatpush.bf16.msra.mxu0 %v274
    %351 = vmatpush.bf16.msra.mxu0 %v273
    %352 = vmatpush.bf16.msra.mxu0 %v272
    %353 = vmatmul.bf16.gmra.mxu0 %v169
    %v354 = vpop.f32.mrf.mxu0
    %v355 = vadd.f32 %v306, %v354
    %v356 = vpop.f32.mrf.mxu0
    %v357 = vadd.f32 %v308, %v356
    %358 = vmatmul.bf16.gmra.mxu0 %v171
    %v359 = vpop.f32.mrf.mxu0
    %v360 = vadd.f32 %v311, %v359
    %v361 = vpop.f32.mrf.mxu0
    %v362 = vadd.f32 %v313, %v361
    %363 = vmatmul.bf16.gmra.mxu0 %v173
    %v364 = vpop.f32.mrf.mxu0
    %v365 = vadd.f32 %v316, %v364
    %v366 = vpop.f32.mrf.mxu0
    %v367 = vadd.f32 %v318, %v366
    %368 = vmatmul.bf16.gmra.mxu0 %v175
    %v369 = vpop.f32.mrf.mxu0
    %v370 = vadd.f32 %v321, %v369
    %v371 = vpop.f32.mrf.mxu0
    %v372 = vadd.f32 %v323, %v371
    %373 = vmatmul.bf16.gmra.mxu0 %v177
    %v374 = vpop.f32.mrf.mxu0
    %v375 = vadd.f32 %v326, %v374
    %v376 = vpop.f32.mrf.mxu0
    %v377 = vadd.f32 %v328, %v376
    %378 = vmatmul.bf16.gmra.mxu0 %v179
    %v379 = vpop.f32.mrf.mxu0
    %v380 = vadd.f32 %v331, %v379
    %v381 = vpop.f32.mrf.mxu0
    %v382 = vadd.f32 %v333, %v381
    %383 = vmatmul.bf16.gmra.mxu0 %v181
    %v384 = vpop.f32.mrf.mxu0
    %v385 = vadd.f32 %v336, %v384
    %v386 = vpop.f32.mrf.mxu0
    %v387 = vadd.f32 %v338, %v386
    %388 = vmatmul.bf16.gmra.mxu0 %v183
    %v389 = vpop.f32.mrf.mxu0
    %v390 = vadd.f32 %v341, %v389
    %v391 = vpop.f32.mrf.mxu0
    %v392 = vadd.f32 %v343, %v391
    %393 = vdwg.mxu0
    %v394 = vmax.f32 %v355, 0.0
    %v395 = vmax.f32 %v357, 0.0
    %v396 = vmax.f32 %v360, 0.0
    %v397 = vmax.f32 %v362, 0.0
    %v398 = vmax.f32 %v365, 0.0
    %v399 = vmax.f32 %v367, 0.0
    %v400 = vmax.f32 %v370, 0.0
    %v401 = vmax.f32 %v372, 0.0
    %v402 = vmax.f32 %v375, 0.0
    %v403 = vmax.f32 %v377, 0.0
    %v404 = vmax.f32 %v380, 0.0
    %v405 = vmax.f32 %v382, 0.0
    %v406 = vmax.f32 %v385, 0.0
    %v407 = vmax.f32 %v387, 0.0
    %v408 = vmax.f32 %v390, 0.0
    %v409 = vmax.f32 %v392, 0.0
    %v410 = vpack.c.bf16 %v395, %v394
    %v411 = vpack.c.bf16 %v397, %v396
    %v412 = vpack.c.bf16 %v399, %v398
    %v413 = vpack.c.bf16 %v401, %v400
    %v414 = vpack.c.bf16 %v403, %v402
    %v415 = vpack.c.bf16 %v405, %v404
    %v416 = vpack.c.bf16 %v407, %v406
    %v417 = vpack.c.bf16 %v409, %v408
    %v418 = vld [vmem:[#allocation7] sm:$0xf]
    %v419 = vld [vmem:[#allocation7 + $0x4] sm:$0xf]
    %v420 = vld [vmem:[#allocation7 + $0x8] sm:$0xf]
    %v421 = vld [vmem:[#allocation7 + $0xc] sm:$0xf]
    %v422 = vld [vmem:[#allocation7 + $0x10] sm:$0xf]
    %v423 = vld [vmem:[#allocation7 + $0x14] sm:$0xf]
    %v424 = vld [vmem:[#allocation7 + $0x18] sm:$0xf]
    %v425 = vld [vmem:[#allocation7 + $0x1c] sm:$0xf]
    %v426 = vld [vmem:[#allocation7 + $0x20] sm:$0xf]
    %v427 = vld [vmem:[#allocation7 + $0x24] sm:$0xf]
    %v428 = vld [vmem:[#allocation7 + $0x28] sm:$0xf]
    %v429 = vld [vmem:[#allocation7 + $0x2c] sm:$0xf]
    %v430 = vld [vmem:[#allocation7 + $0x30] sm:$0xf]
    %v431 = vld [vmem:[#allocation7 + $0x34] sm:$0xf]
    %v432 = vld [vmem:[#allocation7 + $0x38] sm:$0xf]
    %v433 = vld [vmem:[#allocation7 + $0x3c] sm:$0xf]
    %v434 = vld [vmem:[%s4] sm:$0x1]
    %v436 = vperm.slane %v434, 0
    %v454 = vunpack.c.l.b16 %v418
    %v455 = vunpack.c.l.b16 %v419
    %v456 = vunpack.c.l.b16 %v420
    %v457 = vunpack.c.l.b16 %v421
    %v458 = vunpack.c.l.b16 %v422
    %v459 = vunpack.c.l.b16 %v423
    %v460 = vunpack.c.l.b16 %v424
    %v461 = vunpack.c.l.b16 %v425
    %v462 = vunpack.c.l.b16 %v426
    %v463 = vunpack.c.l.b16 %v427
    %v464 = vunpack.c.l.b16 %v428
    %v465 = vunpack.c.l.b16 %v429
    %v466 = vunpack.c.l.b16 %v430
    %v467 = vunpack.c.l.b16 %v431
    %v468 = vunpack.c.l.b16 %v432
    %v469 = vunpack.c.l.b16 %v433
    %v470 = vpack.c.b16 %v455, %v454
    %v471 = vpack.c.b16 %v457, %v456
    %v472 = vpack.c.b16 %v459, %v458
    %v473 = vpack.c.b16 %v461, %v460
    %v474 = vpack.c.b16 %v463, %v462
    %v475 = vpack.c.b16 %v465, %v464
    %v476 = vpack.c.b16 %v467, %v466
    %v477 = vpack.c.b16 %v469, %v468
    %486 = vmatpush.bf16.msra.mxu0 %v477
    %487 = vmatpush.bf16.msra.mxu0 %v476
    %488 = vmatpush.bf16.msra.mxu0 %v475
    %489 = vmatpush.bf16.msra.mxu0 %v474
    %490 = vmatpush.bf16.msra.mxu0 %v473
    %491 = vmatpush.bf16.msra.mxu0 %v472
    %492 = vmatpush.bf16.msra.mxu0 %v471
    %493 = vmatpush.bf16.msra.mxu0 %v470
    %494 = vmatmul.bf16.gmra.mxu0 %v410
    %v495 = vpop.f32.mrf.mxu0
    %v496 = vadd.f32 %v436, %v495
    %v497 = vpop.f32.mrf.mxu0
    %v498 = vadd.f32 %v436, %v497
    %499 = vmatmul.bf16.gmra.mxu0 %v411
    %v500 = vpop.f32.mrf.mxu0
    %v501 = vadd.f32 %v436, %v500
    %v502 = vpop.f32.mrf.mxu0
    %v503 = vadd.f32 %v436, %v502
    %504 = vmatmul.bf16.gmra.mxu0 %v412
    %v505 = vpop.f32.mrf.mxu0
    %v506 = vadd.f32 %v436, %v505
    %v507 = vpop.f32.mrf.mxu0
    %v508 = vadd.f32 %v436, %v507
    %509 = vmatmul.bf16.gmra.mxu0 %v413
    %v510 = vpop.f32.mrf.mxu0
    %v511 = vadd.f32 %v436, %v510
    %v512 = vpop.f32.mrf.mxu0
    %v513 = vadd.f32 %v436, %v512
    %514 = vmatmul.bf16.gmra.mxu0 %v414
    %v515 = vpop.f32.mrf.mxu0
    %v516 = vadd.f32 %v436, %v515
    %v517 = vpop.f32.mrf.mxu0
    %v518 = vadd.f32 %v436, %v517
    %519 = vmatmul.bf16.gmra.mxu0 %v415
    %v520 = vpop.f32.mrf.mxu0
    %v521 = vadd.f32 %v436, %v520
    %v522 = vpop.f32.mrf.mxu0
    %v523 = vadd.f32 %v436, %v522
    %524 = vmatmul.bf16.gmra.mxu0 %v416
    %v525 = vpop.f32.mrf.mxu0
    %v526 = vadd.f32 %v436, %v525
    %v527 = vpop.f32.mrf.mxu0
    %v528 = vadd.f32 %v436, %v527
    %529 = vmatmul.bf16.gmra.mxu0 %v417
    %v530 = vpop.f32.mrf.mxu0
    %v531 = vadd.f32 %v436, %v530
    %v532 = vpop.f32.mrf.mxu0
    %v533 = vadd.f32 %v436, %v532
    %534 = vdwg.mxu0
    %v535 = vmax.f32 %v496, 0.0
    %v536 = vmax.f32 %v498, 0.0
    %v537 = vmax.f32 %v501, 0.0
    %v538 = vmax.f32 %v503, 0.0
    %v539 = vmax.f32 %v506, 0.0
    %v540 = vmax.f32 %v508, 0.0
    %v541 = vmax.f32 %v511, 0.0
    %v542 = vmax.f32 %v513, 0.0
    %v543 = vmax.f32 %v516, 0.0
    %v544 = vmax.f32 %v518, 0.0
    %v545 = vmax.f32 %v521, 0.0
    %v546 = vmax.f32 %v523, 0.0
    %v547 = vmax.f32 %v526, 0.0
    %v548 = vmax.f32 %v528, 0.0
    %v549 = vmax.f32 %v531, 0.0
    %v550 = vmax.f32 %v533, 0.0
    %v551 = vmul.f32 %v535, %v535
    %v552 = vmul.f32 %v536, %v536
    %v553 = vmul.f32 %v537, %v537
    %v554 = vmul.f32 %v538, %v538
    %v555 = vmul.f32 %v539, %v539
    %v556 = vmul.f32 %v540, %v540
    %v557 = vmul.f32 %v541, %v541
    %v558 = vmul.f32 %v542, %v542
    %v559 = vmul.f32 %v543, %v543
    %v560 = vmul.f32 %v544, %v544
    %v561 = vmul.f32 %v545, %v545
    %v562 = vmul.f32 %v546, %v546
    %v563 = vmul.f32 %v547, %v547
    %v564 = vmul.f32 %v548, %v548
    %v565 = vmul.f32 %v549, %v549
    %v566 = vmul.f32 %v550, %v550
    %567 = vadd.xlane.f32.xlu0 %v551
    %v568 = vpop.xlane.xlu0 %567
    %569 = vadd.xlane.f32.xlu0 %v552
    %v570 = vpop.xlane.xlu0 %569
    %571 = vadd.xlane.f32.xlu0 %v553
    %v572 = vpop.xlane.xlu0 %571
    %573 = vadd.xlane.f32.xlu0 %v554
    %v574 = vpop.xlane.xlu0 %573
    %575 = vadd.xlane.f32.xlu0 %v555
    %v576 = vpop.xlane.xlu0 %575
    %577 = vadd.xlane.f32.xlu0 %v556
    %v578 = vpop.xlane.xlu0 %577
    %579 = vadd.xlane.f32.xlu0 %v557
    %v580 = vpop.xlane.xlu0 %579
    %581 = vadd.xlane.f32.xlu0 %v558
    %v582 = vpop.xlane.xlu0 %581
    %583 = vadd.xlane.f32.xlu0 %v559
    %v584 = vpop.xlane.xlu0 %583
    %585 = vadd.xlane.f32.xlu0 %v560
    %v586 = vpop.xlane.xlu0 %585
    %587 = vadd.xlane.f32.xlu0 %v561
    %v588 = vpop.xlane.xlu0 %587
    %589 = vadd.xlane.f32.xlu0 %v562
    %v590 = vpop.xlane.xlu0 %589
    %591 = vadd.xlane.f32.xlu0 %v563
    %v592 = vpop.xlane.xlu0 %591
    %593 = vadd.xlane.f32.xlu0 %v564
    %v594 = vpop.xlane.xlu0 %593
    %595 = vadd.xlane.f32.xlu0 %v565
    %v596 = vpop.xlane.xlu0 %595
    %597 = vadd.xlane.f32.xlu0 %v566
    %v598 = vpop.xlane.xlu0 %597
    %v599 = vmax.f32 %v568, 1e-24
    %v600 = vmax.f32 %v570, 1e-24
    %v601 = vmax.f32 %v572, 1e-24
    %v602 = vmax.f32 %v574, 1e-24
    %v603 = vmax.f32 %v576, 1e-24
    %v604 = vmax.f32 %v578, 1e-24
    %v605 = vmax.f32 %v580, 1e-24
    %v606 = vmax.f32 %v582, 1e-24
    %v607 = vmax.f32 %v584, 1e-24
    %v608 = vmax.f32 %v586, 1e-24
    %v609 = vmax.f32 %v588, 1e-24
    %v610 = vmax.f32 %v590, 1e-24
    %v611 = vmax.f32 %v592, 1e-24
    %v612 = vmax.f32 %v594, 1e-24
    %v613 = vmax.f32 %v596, 1e-24
    %v614 = vmax.f32 %v598, 1e-24
    %v615 = vrsqrt.pop %v599
    %v616 = vmul.f32 %v615, %v599
    %v617 = vmul.f32 %v616, %v615
    %v618 = vmul.f32 0.5, %v617
    %v619 = vsub.f32 1.5, %v618
    %v620 = vmul.f32 %v615, %v619
    %vm621 = vweird.f32 %v599
    %vm622 = vweird.f32 %v615
    %vm623 = vmor %vm621, %vm622
    %v624 = vsel %vm623, %v615, %v620
    %v625 = vrsqrt.pop %v600
    %v626 = vmul.f32 %v625, %v600
    %v627 = vmul.f32 %v626, %v625
    %v628 = vmul.f32 0.5, %v627
    %v629 = vsub.f32 1.5, %v628
    %v630 = vmul.f32 %v625, %v629
    %vm631 = vweird.f32 %v600
    %vm632 = vweird.f32 %v625
    %vm633 = vmor %vm631, %vm632
    %v634 = vsel %vm633, %v625, %v630
    %v635 = vrsqrt.pop %v601
    %v636 = vmul.f32 %v635, %v601
    %v637 = vmul.f32 %v636, %v635
    %v638 = vmul.f32 0.5, %v637
    %v639 = vsub.f32 1.5, %v638
    %v640 = vmul.f32 %v635, %v639
    %vm641 = vweird.f32 %v601
    %vm642 = vweird.f32 %v635
    %vm643 = vmor %vm641, %vm642
    %v644 = vsel %vm643, %v635, %v640
    %v645 = vrsqrt.pop %v602
    %v646 = vmul.f32 %v645, %v602
    %v647 = vmul.f32 %v646, %v645
    %v648 = vmul.f32 0.5, %v647
    %v649 = vsub.f32 1.5, %v648
    %v650 = vmul.f32 %v645, %v649
    %vm651 = vweird.f32 %v602
    %vm652 = vweird.f32 %v645
    %vm653 = vmor %vm651, %vm652
    %v654 = vsel %vm653, %v645, %v650
    %v655 = vrsqrt.pop %v603
    %v656 = vmul.f32 %v655, %v603
    %v657 = vmul.f32 %v656, %v655
    %v658 = vmul.f32 0.5, %v657
    %v659 = vsub.f32 1.5, %v658
    %v660 = vmul.f32 %v655, %v659
    %vm661 = vweird.f32 %v603
    %vm662 = vweird.f32 %v655
    %vm663 = vmor %vm661, %vm662
    %v664 = vsel %vm663, %v655, %v660
    %v665 = vrsqrt.pop %v604
    %v666 = vmul.f32 %v665, %v604
    %v667 = vmul.f32 %v666, %v665
    %v668 = vmul.f32 0.5, %v667
    %v669 = vsub.f32 1.5, %v668
    %v670 = vmul.f32 %v665, %v669
    %vm671 = vweird.f32 %v604
    %vm672 = vweird.f32 %v665
    %vm673 = vmor %vm671, %vm672
    %v674 = vsel %vm673, %v665, %v670
    %v675 = vrsqrt.pop %v605
    %v676 = vmul.f32 %v675, %v605
    %v677 = vmul.f32 %v676, %v675
    %v678 = vmul.f32 0.5, %v677
    %v679 = vsub.f32 1.5, %v678
    %v680 = vmul.f32 %v675, %v679
    %vm681 = vweird.f32 %v605
    %vm682 = vweird.f32 %v675
    %vm683 = vmor %vm681, %vm682
    %v684 = vsel %vm683, %v675, %v680
    %v685 = vrsqrt.pop %v606
    %v686 = vmul.f32 %v685, %v606
    %v687 = vmul.f32 %v686, %v685
    %v688 = vmul.f32 0.5, %v687
    %v689 = vsub.f32 1.5, %v688
    %v690 = vmul.f32 %v685, %v689
    %vm691 = vweird.f32 %v606
    %vm692 = vweird.f32 %v685
    %vm693 = vmor %vm691, %vm692
    %v694 = vsel %vm693, %v685, %v690
    %v695 = vrsqrt.pop %v607
    %v696 = vmul.f32 %v695, %v607
    %v697 = vmul.f32 %v696, %v695
    %v698 = vmul.f32 0.5, %v697
    %v699 = vsub.f32 1.5, %v698
    %v700 = vmul.f32 %v695, %v699
    %vm701 = vweird.f32 %v607
    %vm702 = vweird.f32 %v695
    %vm703 = vmor %vm701, %vm702
    %v704 = vsel %vm703, %v695, %v700
    %v705 = vrsqrt.pop %v608
    %v706 = vmul.f32 %v705, %v608
    %v707 = vmul.f32 %v706, %v705
    %v708 = vmul.f32 0.5, %v707
    %v709 = vsub.f32 1.5, %v708
    %v710 = vmul.f32 %v705, %v709
    %vm711 = vweird.f32 %v608
    %vm712 = vweird.f32 %v705
    %vm713 = vmor %vm711, %vm712
    %v714 = vsel %vm713, %v705, %v710
    %v715 = vrsqrt.pop %v609
    %v716 = vmul.f32 %v715, %v609
    %v717 = vmul.f32 %v716, %v715
    %v718 = vmul.f32 0.5, %v717
    %v719 = vsub.f32 1.5, %v718
    %v720 = vmul.f32 %v715, %v719
    %vm721 = vweird.f32 %v609
    %vm722 = vweird.f32 %v715
    %vm723 = vmor %vm721, %vm722
    %v724 = vsel %vm723, %v715, %v720
    %v725 = vrsqrt.pop %v610
    %v726 = vmul.f32 %v725, %v610
    %v727 = vmul.f32 %v726, %v725
    %v728 = vmul.f32 0.5, %v727
    %v729 = vsub.f32 1.5, %v728
    %v730 = vmul.f32 %v725, %v729
    %vm731 = vweird.f32 %v610
    %vm732 = vweird.f32 %v725
    %vm733 = vmor %vm731, %vm732
    %v734 = vsel %vm733, %v725, %v730
    %v735 = vrsqrt.pop %v611
    %v736 = vmul.f32 %v735, %v611
    %v737 = vmul.f32 %v736, %v735
    %v738 = vmul.f32 0.5, %v737
    %v739 = vsub.f32 1.5, %v738
    %v740 = vmul.f32 %v735, %v739
    %vm741 = vweird.f32 %v611
    %vm742 = vweird.f32 %v735
    %vm743 = vmor %vm741, %vm742
    %v744 = vsel %vm743, %v735, %v740
    %v745 = vrsqrt.pop %v612
    %v746 = vmul.f32 %v745, %v612
    %v747 = vmul.f32 %v746, %v745
    %v748 = vmul.f32 0.5, %v747
    %v749 = vsub.f32 1.5, %v748
    %v750 = vmul.f32 %v745, %v749
    %vm751 = vweird.f32 %v612
    %vm752 = vweird.f32 %v745
    %vm753 = vmor %vm751, %vm752
    %v754 = vsel %vm753, %v745, %v750
    %v755 = vrsqrt.pop %v613
    %v756 = vmul.f32 %v755, %v613
    %v757 = vmul.f32 %v756, %v755
    %v758 = vmul.f32 0.5, %v757
    %v759 = vsub.f32 1.5, %v758
    %v760 = vmul.f32 %v755, %v759
    %vm761 = vweird.f32 %v613
    %vm762 = vweird.f32 %v755
    %vm763 = vmor %vm761, %vm762
    %v764 = vsel %vm763, %v755, %v760
    %v765 = vrsqrt.pop %v614
    %v766 = vmul.f32 %v765, %v614
    %v767 = vmul.f32 %v766, %v765
    %v768 = vmul.f32 0.5, %v767
    %v769 = vsub.f32 1.5, %v768
    %v770 = vmul.f32 %v765, %v769
    %vm771 = vweird.f32 %v614
    %vm772 = vweird.f32 %v765
    %vm773 = vmor %vm771, %vm772
    %v774 = vsel %vm773, %v765, %v770
    %v775 = vmul.f32 %v535, %v624
    %v776 = vmul.f32 %v536, %v634
    %v777 = vmul.f32 %v537, %v644
    %v778 = vmul.f32 %v538, %v654
    %v779 = vmul.f32 %v539, %v664
    %v780 = vmul.f32 %v540, %v674
    %v781 = vmul.f32 %v541, %v684
    %v782 = vmul.f32 %v542, %v694
    %v783 = vmul.f32 %v543, %v704
    %v784 = vmul.f32 %v544, %v714
    %v785 = vmul.f32 %v545, %v724
    %v786 = vmul.f32 %v546, %v734
    %v787 = vmul.f32 %v547, %v744
    %v788 = vmul.f32 %v548, %v754
    %v789 = vmul.f32 %v549, %v764
    %v790 = vmul.f32 %v550, %v774
    %791 = vst [vmem:[#allocation8] sm:$0xff] %v775
    %792 = vst [vmem:[#allocation8 + $0x8] sm:$0xff] %v776
    %793 = vst [vmem:[#allocation8 + $0x10] sm:$0xff] %v777
    %794 = vst [vmem:[#allocation8 + $0x18] sm:$0xff] %v778
    %795 = vst [vmem:[#allocation8 + $0x20] sm:$0xff] %v779
    %796 = vst [vmem:[#allocation8 + $0x28] sm:$0xff] %v780
    %797 = vst [vmem:[#allocation8 + $0x30] sm:$0xff] %v781
    %798 = vst [vmem:[#allocation8 + $0x38] sm:$0xff] %v782
    %799 = vst [vmem:[#allocation8 + $0x40] sm:$0xff] %v783
    %800 = vst [vmem:[#allocation8 + $0x48] sm:$0xff] %v784
    %801 = vst [vmem:[#allocation8 + $0x50] sm:$0xff] %v785
    %802 = vst [vmem:[#allocation8 + $0x58] sm:$0xff] %v786
    %803 = vst [vmem:[#allocation8 + $0x60] sm:$0xff] %v787
    %804 = vst [vmem:[#allocation8 + $0x68] sm:$0xff] %v788
    %805 = vst [vmem:[#allocation8 + $0x70] sm:$0xff] %v789
    %806 = vst [vmem:[#allocation8 + $0x78] sm:$0xff] %v790
    // Predicated region
    $region34: #{tpu_custom_call.1} parent=1 // pred_check
      _
    $region35: #{tpu_custom_call.1} parent=1 // pred_check_branch
      %808 = sbr.rel (0) target = $region37
    $region36: #{tpu_custom_call.1} parent=1 // pred_region
      %810 = vsyncadd [#allocation4], 0
      %s811 = sshll.u32 [#allocation8], 4
      %s812 = int_to_ptr.vmem [resolvable:$true] %s811
      %s813 = sshll.u32 %s5, 4
      %s814 = int_to_ptr.hbm [resolvable:$true] %s813
      %819 = dma.vmem_to_hbm [thread:$0]  %s812, 2048, %s814, [#allocation4], 128, 128, 8
    $region37: #{tpu_custom_call.1} parent=1 // pred_fallthru
      _
    // Predicated region
    $region38: #{tpu_custom_call.1} parent=1 // pred_check
      _
    $region39: #{tpu_custom_call.1} parent=1 // pred_check_branch
      %821 = sbr.rel (0) target = $region41
    $region40: #{tpu_custom_call.1} parent=1 // pred_region
      %823 = dma.done [#allocation4], 2048
    $region41: #{tpu_custom_call.1} parent=1 // pred_fallthru
      _
    %824 = vsyncpa [#allocation3], 1
    %825 = vsyncpa [#allocation6], 1
    %826 = vsyncpa [#allocation4], 1

</llo_original>
